<compile_context>
chip_gen: v7x
topology: tpu7x:2x2x1
jax: 0.10.0
libtpu: 0.0.40
codegen_flags: <defaults>
</compile_context>

<pallas_src>
import math
import functools

import jax
import jax.numpy as jnp
from jax.experimental import pallas as pl
from jax.experimental.pallas import tpu as pltpu


_VMEM_LIMIT_BYTES = 48 * 1024 * 1024    # safe on v5e/v6e (128 MiB) and v7x (64 MiB)
_TILE_BUDGET_BYTES = 24 * 1024 * 1024   # row-block working-set budget (< limit/2)


def _conv_stats_kernel(x_ref, w_ref, conv_ref, sum_ref, m2_ref, *, tr, valid_rows):
    """Conv (single im2col matmul) + per-block BN partial statistics.

    x_ref:    (tr, G*K2)      lane-packed im2col rows (bf16 or f32)
    w_ref:    (G*K2, G*Cout)  block-diagonal im2col weight  kron(I_G, w2d)
    conv_ref: (tr, G*Cout)    f32 conv output slab block
    sum_ref:  (1, 8, G*Cout)  per-block column sums (broadcast over sublanes)
    m2_ref:   (1, 8, G*Cout)  per-block centered sum of squares (ditto)
    """
    blk = pl.program_id(0)
    conv = jnp.dot(x_ref[...], w_ref[...], preferred_element_type=jnp.float32)
    conv_ref[...] = conv

    # Row-validity mask: rows past `valid_rows` are zero padding added by the
    # wrapper and must not contribute to the statistics.
    n_valid = jnp.clip(valid_rows - blk * tr, 1, tr)
    rid = jax.lax.broadcasted_iota(jnp.int32, (tr, 1), 0)
    mask = (rid < n_valid).astype(jnp.float32)                     # (tr, 1)

    s = jnp.sum(conv * mask, axis=0, keepdims=True)                # (1, wc)
    mean_b = s / n_valid.astype(jnp.float32)
    d = (conv - mean_b) * mask
    m2 = jnp.sum(d * d, axis=0, keepdims=True)                     # (1, wc)

    wc = s.shape[-1]
    sum_ref[...] = jnp.broadcast_to(s[:, None, :], (1, 8, wc))
    m2_ref[...] = jnp.broadcast_to(m2[:, None, :], (1, 8, wc))


def _affine_relu_kernel(y_ref, scale_ref, shift_ref, o_ref):
    """BatchNorm affine + ReLU, applied in place on the conv slab."""
    o_ref[...] = jnp.maximum(y_ref[...] * scale_ref[...] + shift_ref[...], 0.0)


def _pick_group(total_pixels, cout):
    """Largest divisor of N*H*W with G <= ceil(128/Cout) (=> ~128 output lanes)."""
    target = max(1, math.ceil(128 / cout))
    g = 1
    for cand in range(1, min(total_pixels, target) + 1):
        if total_pixels % cand == 0:
            g = cand
    return g


def _pick_row_block(nrows, lane_in, wc, in_bytes, row_block):
    """Row-block size: multiple of 8, sized from a VMEM budget (or user value)."""
    if row_block is None:
        # double-buffered input block + double-buffered f32 conv-out block
        per_row = 2 * lane_in * in_bytes + 2 * wc * 4
        tr = int(_TILE_BUDGET_BYTES // max(per_row, 1))
        tr = max(8, min((tr // 8) * 8, 1024))
    else:
        tr = max(8, (int(row_block) // 8) * 8)
    return min(tr, ((nrows + 7) // 8) * 8)


def conv_norm_act(x_nchw, w_oihw, gamma, beta, *, stride=1, eps=1e-6,
                  compute_dtype=jnp.bfloat16, row_block=None):
    """ConvNormAct forward (conv -> BatchNorm2d(training stats) -> ReLU).

    x_nchw: (N, Cin, H, W); w_oihw: (Cout, Cin, KH, KW); gamma/beta: (Cout,).
    Returns (N, Cout, H, W) float32.  Call under jax.jit (kernel 2 aliases its
    input buffer in place).
    """
    N, Cin, H, W = x_nchw.shape
    Cout, Cin_w, KH, KW = w_oihw.shape
    assert Cin_w == Cin, "groups != 1 not implemented"      # TODO(synk)
    assert stride == 1, "only stride=1 implemented"         # TODO(synk)
    assert KH == KW and KH % 2 == 1, "only odd square kernels match this padding"
    pad = math.ceil((KH - stride) / 2)

    # ---------------- wrapper: layout plumbing only ----------------
    # NCHW -> NHWC, zero-pad spatially, im2col with columns ordered (kh, kw, cin).
    x_nhwc = jnp.transpose(x_nchw, (0, 2, 3, 1)).astype(jnp.float32)
    x_pad = jnp.pad(x_nhwc, ((0, 0), (pad, pad), (pad, pad), (0, 0)))
    patches = [x_pad[:, kh:kh + H, kw:kw + W, :]
               for kh in range(KH) for kw in range(KW)]
    k2 = KH * KW * Cin
    x_cols = jnp.concatenate(patches, axis=-1)              # (N, H, W, K2)

    # Pack G consecutive pixels per row so the output slab is ~128 lanes wide.
    P = N * H * W
    G = _pick_group(P, Cout)
    wc = G * Cout
    lane_in = G * k2
    R = P // G                                              # logical rows
    in_bytes = jnp.dtype(compute_dtype).itemsize
    tr = _pick_row_block(R, lane_in, wc, in_bytes, row_block)
    R_pad = ((R + tr - 1) // tr) * tr
    nb = R_pad // tr

    x_rows = x_cols.reshape(R, lane_in)
    if R_pad > R:
        x_rows = jnp.pad(x_rows, ((0, R_pad - R), (0, 0)))  # masked out in-kernel
    x_rows = x_rows.astype(compute_dtype)

    # im2col weight (K2, Cout), block-diagonal over the G-pixel group only.
    w2d = jnp.transpose(w_oihw, (2, 3, 1, 0)).reshape(k2, Cout).astype(jnp.float32)
    w_bd = jnp.kron(jnp.eye(G, dtype=jnp.float32), w2d).astype(compute_dtype)

    cparams = pltpu.CompilerParams(
        dimension_semantics=("parallel",),     # no shared scratch -> megacore OK
        vmem_limit_bytes=_VMEM_LIMIT_BYTES,
    )

    # ---------------- kernel 1: conv + per-block BN partials ----------------
    kernel1 = functools.partial(_conv_stats_kernel, tr=tr, valid_rows=R)
    conv_slab, sum_blk, m2_blk = pl.pallas_call(
        kernel1,
        out_shape=(jax.ShapeDtypeStruct((R_pad, wc), jnp.float32),
                   jax.ShapeDtypeStruct((nb, 8, wc), jnp.float32),
                   jax.ShapeDtypeStruct((nb, 8, wc), jnp.float32)),
        grid_spec=pltpu.PrefetchScalarGridSpec(
            num_scalar_prefetch=0,
            grid=(nb,),
            in_specs=[
                pl.BlockSpec((tr, lane_in), lambda j: (j, 0)),
                # constant-index weight: keep it single-buffered in VMEM
                pl.BlockSpec((lane_in, wc), lambda j: (0, 0),
                             pipeline_mode=pl.Buffered(buffer_count=1)),
            ],
            out_specs=[
                pl.BlockSpec((tr, wc), lambda j: (j, 0)),
                pl.BlockSpec((1, 8, wc), lambda j: (j, 0, 0)),
                pl.BlockSpec((1, 8, wc), lambda j: (j, 0, 0)),
            ],
        ),
        compiler_params=cparams,
    )(x_rows, w_bd)

    # -------- BN statistics (tiny, wrapper-side, f32): Chan parallel merge -----
    sums = sum_blk[:, 0, :].reshape(nb, G, Cout)
    m2s = m2_blk[:, 0, :].reshape(nb, G, Cout)
    cnts = jnp.clip(R - jnp.arange(nb) * tr, 1, tr).astype(jnp.float32)  # rows/blk
    n_total = float(P)                                       # elements per channel
    mean_blk = sums / cnts[:, None, None]
    mean_c = jnp.sum(sums, axis=(0, 1)) / n_total            # (Cout,)
    m2_c = jnp.sum(m2s + cnts[:, None, None] * (mean_blk - mean_c) ** 2, axis=(0, 1))
    var_c = m2_c / n_total                                   # biased, as BN forward
    inv_std = jax.lax.rsqrt(var_c + eps)
    scale_c = gamma.astype(jnp.float32) * inv_std
    shift_c = beta.astype(jnp.float32) - mean_c * scale_c
    scale_t = jnp.tile(scale_c, G).reshape(1, wc)
    shift_t = jnp.tile(shift_c, G).reshape(1, wc)

    # -------- kernel 2: y = relu(conv*scale + shift), in place on the slab -----
    out2d = pl.pallas_call(
        _affine_relu_kernel,
        out_shape=jax.ShapeDtypeStruct((R_pad, wc), jnp.float32),
        grid_spec=pltpu.PrefetchScalarGridSpec(
            num_scalar_prefetch=0,
            grid=(nb,),
            in_specs=[
                pl.BlockSpec((tr, wc), lambda j: (j, 0)),
                pl.BlockSpec((1, wc), lambda j: (0, 0)),
                pl.BlockSpec((1, wc), lambda j: (0, 0)),
            ],
            out_specs=pl.BlockSpec((tr, wc), lambda j: (j, 0)),
        ),
        input_output_aliases={0: 0},          # reuse the conv-slab HBM buffer
        compiler_params=cparams,
    )(conv_slab, scale_t, shift_t)

    # (R, G*Cout) -> (N, H, W, Cout) -> NCHW (pure layout, handled by XLA).
    out_nhwc = out2d[:R].reshape(N, H, W, Cout)
    return jnp.transpose(out_nhwc, (0, 3, 1, 2))


def _reference(x_nchw, w_oihw, gamma, beta, eps=1e-6):
    k = w_oihw.shape[-1]
    pad = math.ceil((k - 1) / 2)
    y = jax.lax.conv_general_dilated(
        x_nchw, w_oihw, window_strides=(1, 1), padding=((pad, pad), (pad, pad)),
        dimension_numbers=("NCHW", "OIHW", "NCHW"),
        precision=jax.lax.Precision.HIGHEST)
    mean = y.mean(axis=(0, 2, 3), keepdims=True)
    var = ((y - mean) ** 2).mean(axis=(0, 2, 3), keepdims=True)
    y = (y - mean) / jnp.sqrt(var + eps)
    y = y * gamma.reshape(1, -1, 1, 1) + beta.reshape(1, -1, 1, 1)
    return jnp.maximum(y, 0.0)


if __name__ == "__main__":
    N, Cin, H, W = 2, 4, 16, 16
    Cout, K = 8, 3

    key = jax.random.PRNGKey(0)
    kx, kw, kg, kb = jax.random.split(key, 4)
    x = jax.random.normal(kx, (N, Cin, H, W), jnp.float32)
    w = jax.random.normal(kw, (Cout, Cin, K, K), jnp.float32) * 0.1
    gamma = 1.0 + 0.1 * jax.random.normal(kg, (Cout,), jnp.float32)
    beta = 0.1 * jax.random.normal(kb, (Cout,), jnp.float32)

    ref = _reference(x, w, gamma, beta)

    # Default (perf) path: bf16 operands, f32 accumulation.  row_block=8 so the
    # tiny demo still runs a multi-step pipelined grid (R = 32 rows -> 4 blocks).
    fwd_bf16 = jax.jit(functools.partial(conv_norm_act, row_block=8))
    out = jax.block_until_ready(fwd_bf16(x, w, gamma, beta))
    assert out.shape == (N, Cout, H, W)
    assert jnp.allclose(out, ref, atol=5e-2, rtol=5e-2), "bf16 path mismatch vs reference"

    # f32 path with a deliberately non-dividing row block: exercises row padding,
    # the in-kernel validity mask and the unequal-count stats merge.  Tight check.
    fwd_f32 = jax.jit(functools.partial(conv_norm_act,
                                        compute_dtype=jnp.float32, row_block=24))
    out32 = jax.block_until_ready(fwd_f32(x, w, gamma, beta))
    assert jnp.allclose(out32, ref, atol=1e-3, rtol=1e-3), "f32 path mismatch vs reference"

    print("KERNEL_OK")
</pallas_src>

<mosaic_0001>
module attributes {stable_mosaic.version = 11 : i64} {
  func.func @_conv_stats_kernel(%arg0: i32, %arg1: memref<8x576xbf16, #tpu.memory_space<vmem>>, %arg2: memref<576x128xbf16, #tpu.memory_space<vmem>>, %arg3: memref<8x128xf32, #tpu.memory_space<vmem>>, %arg4: memref<1x8x128xf32, #tpu.memory_space<vmem>>, %arg5: memref<1x8x128xf32, #tpu.memory_space<vmem>>) attributes {dimension_semantics = [#tpu.dimension_semantics<parallel>], iteration_bounds = array<i64: 4>, scalar_prefetch = 0 : i64, scratch_operands = 0 : i64, tpu.core_type = #tpu.core_type<tc>, window_params = [{transform_indices = @transform_0, window_bounds = array<i64: 8, 576>}, {pipeline_mode = #tpu.pipeline_mode<synchronous>, transform_indices = @transform_1, window_bounds = array<i64: 576, 128>}, {transform_indices = @transform_2, window_bounds = array<i64: 8, 128>}, {transform_indices = @transform_3, window_bounds = array<i64: 1, 8, 128>}, {transform_indices = @transform_4, window_bounds = array<i64: 1, 8, 128>}]} {
    %c0 = arith.constant 0 : index
    %c0_0 = arith.constant 0 : index
    %0 = vector.load %arg1[%c0, %c0_0] : memref<8x576xbf16, #tpu.memory_space<vmem>>, vector<8x576xbf16>
    %c0_1 = arith.constant 0 : index
    %c0_2 = arith.constant 0 : index
    %1 = vector.load %arg2[%c0_1, %c0_2] : memref<576x128xbf16, #tpu.memory_space<vmem>>, vector<576x128xbf16>
    %cst = arith.constant dense<0.000000e+00> : vector<8x128xf32>
    %2 = tpu.matmul %0, %1, %cst {dimension_numbers = #tpu.dot_dimension_numbers<[1], [0], [0], [1], [0, 0, 1, 1], [], []>} : vector<8x576xbf16>, vector<576x128xbf16>, vector<8x128xf32> -> vector<8x128xf32>
    %c0_3 = arith.constant 0 : index
    %c0_4 = arith.constant 0 : index
    %3 = vector.load %arg3[%c0_3, %c0_4] : memref<8x128xf32, #tpu.memory_space<vmem>>, vector<8x128xf32>
    tpu.vector_store %arg3[%c0_3, %c0_4], %2 {strides = array<i32>} : memref<8x128xf32, #tpu.memory_space<vmem>>, vector<8x128xf32>,
    %c8_i32 = arith.constant 8 : i32
    %4 = arith.muli %arg0, %c8_i32 : i32
    %c32_i32 = arith.constant 32 : i32
    %5 = arith.subi %c32_i32, %4 : i32
    %c1_i32 = arith.constant 1 : i32
    %c8_i32_5 = arith.constant 8 : i32
    %6 = arith.maxsi %c1_i32, %5 : i32
    %7 = arith.minsi %c8_i32_5, %6 : i32
    %8 = tpu.iota {dimensions = array<i32: 0>} : vector<8x1xi32>
    %9 = vector.broadcast %7 : i32 to vector<8x1xi32>
    %10 = arith.cmpi slt, %8, %9 : vector<8x1xi32>
    %11 = arith.extui %10 : vector<8x1xi1> to vector<8x1xi32>
    %12 = arith.sitofp %11 : vector<8x1xi32> to vector<8x1xf32>
    %13 = vector.broadcast %12 : vector<8x1xf32> to vector<8x128xf32>
    %14 = arith.mulf %2, %13 : vector<8x128xf32>
    %cst_6 = arith.constant dense<0.000000e+00> : vector<128xf32>
    %15 = vector.multi_reduction <add>, %14, %cst_6 [0] : vector<8x128xf32> to vector<128xf32>
    %16 = vector.shape_cast %15 : vector<128xf32> to vector<1x128xf32>
    %17 = arith.sitofp %7 : i32 to f32
    %18 = vector.broadcast %17 : f32 to vector<1x128xf32>
    %19 = arith.divf %16, %18 : vector<1x128xf32>
    %20 = vector.broadcast %19 : vector<1x128xf32> to vector<8x128xf32>
    %21 = arith.subf %2, %20 : vector<8x128xf32>
    %22 = vector.broadcast %12 : vector<8x1xf32> to vector<8x128xf32>
    %23 = arith.mulf %21, %22 : vector<8x128xf32>
    %24 = arith.mulf %23, %23 : vector<8x128xf32>
    %cst_7 = arith.constant dense<0.000000e+00> : vector<128xf32>
    %25 = vector.multi_reduction <add>, %24, %cst_7 [0] : vector<8x128xf32> to vector<128xf32>
    %26 = vector.shape_cast %25 : vector<128xf32> to vector<1x128xf32>
    %27 = vector.shape_cast %16 : vector<1x128xf32> to vector<1x1x128xf32>
    %28 = vector.shape_cast %27 : vector<1x1x128xf32> to vector<1x1x128xf32>
    %29 = vector.broadcast %28 : vector<1x1x128xf32> to vector<1x8x128xf32>
    %c0_8 = arith.constant 0 : index
    %c0_9 = arith.constant 0 : index
    %c0_10 = arith.constant 0 : index
    %30 = vector.load %arg4[%c0_8, %c0_9, %c0_10] : memref<1x8x128xf32, #tpu.memory_space<vmem>>, vector<1x8x128xf32>
    tpu.vector_store %arg4[%c0_8, %c0_9, %c0_10], %29 {strides = array<i32>} : memref<1x8x128xf32, #tpu.memory_space<vmem>>, vector<1x8x128xf32>,
    %31 = vector.shape_cast %26 : vector<1x128xf32> to vector<1x1x128xf32>
    %32 = vector.shape_cast %31 : vector<1x1x128xf32> to vector<1x1x128xf32>
    %33 = vector.broadcast %32 : vector<1x1x128xf32> to vector<1x8x128xf32>
    %c0_11 = arith.constant 0 : index
    %c0_12 = arith.constant 0 : index
    %c0_13 = arith.constant 0 : index
    %34 = vector.load %arg5[%c0_11, %c0_12, %c0_13] : memref<1x8x128xf32, #tpu.memory_space<vmem>>, vector<1x8x128xf32>
    tpu.vector_store %arg5[%c0_11, %c0_12, %c0_13], %33 {strides = array<i32>} : memref<1x8x128xf32, #tpu.memory_space<vmem>>, vector<1x8x128xf32>,
    return
  }
  func.func @transform_0(%arg0: i32) -> (i32, i32) {
    %c0_i32 = arith.constant 0 : i32
    %c0_i32_0 = arith.constant 0 : i32
    return %arg0, %c0_i32 : i32, i32
  }
  func.func @transform_1(%arg0: i32) -> (i32, i32) {
    %c0_i32 = arith.constant 0 : i32
    %c0_i32_0 = arith.constant 0 : i32
    %c0_i32_1 = arith.constant 0 : i32
    return %c0_i32, %c0_i32_0 : i32, i32
  }
  func.func @transform_2(%arg0: i32) -> (i32, i32) {
    %c0_i32 = arith.constant 0 : i32
    %c0_i32_0 = arith.constant 0 : i32
    return %arg0, %c0_i32 : i32, i32
  }
  func.func @transform_3(%arg0: i32) -> (i32, i32, i32) {
    %c0_i32 = arith.constant 0 : i32
    %c0_i32_0 = arith.constant 0 : i32
    %c0_i32_1 = arith.constant 0 : i32
    return %arg0, %c0_i32, %c0_i32_0 : i32, i32, i32
  }
  func.func @transform_4(%arg0: i32) -> (i32, i32, i32) {
    %c0_i32 = arith.constant 0 : i32
    %c0_i32_0 = arith.constant 0 : i32
    %c0_i32_1 = arith.constant 0 : i32
    return %arg0, %c0_i32, %c0_i32_0 : i32, i32, i32
  }
}

module attributes {stable_mosaic.version = 11 : i64} {
  func.func @_affine_relu_kernel(%arg0: i32, %arg1: memref<8x128xf32, #tpu.memory_space<vmem>>, %arg2: memref<1x128xf32, #tpu.memory_space<vmem>>, %arg3: memref<1x128xf32, #tpu.memory_space<vmem>>, %arg4: memref<8x128xf32, #tpu.memory_space<vmem>>) attributes {dimension_semantics = [#tpu.dimension_semantics<parallel>], iteration_bounds = array<i64: 4>, scalar_prefetch = 0 : i64, scratch_operands = 0 : i64, tpu.core_type = #tpu.core_type<tc>, window_params = [{transform_indices = @transform_0, window_bounds = array<i64: 8, 128>}, {pipeline_mode = #tpu.pipeline_mode<synchronous>, transform_indices = @transform_1, window_bounds = array<i64: 1, 128>}, {pipeline_mode = #tpu.pipeline_mode<synchronous>, transform_indices = @transform_2, window_bounds = array<i64: 1, 128>}, {transform_indices = @transform_3, window_bounds = array<i64: 8, 128>}]} {
    %c0 = arith.constant 0 : index
    %c0_0 = arith.constant 0 : index
    %0 = vector.load %arg1[%c0, %c0_0] : memref<8x128xf32, #tpu.memory_space<vmem>>, vector<8x128xf32>
    %c0_1 = arith.constant 0 : index
    %c0_2 = arith.constant 0 : index
    %1 = vector.load %arg2[%c0_1, %c0_2] : memref<1x128xf32, #tpu.memory_space<vmem>>, vector<1x128xf32>
    %2 = vector.broadcast %1 : vector<1x128xf32> to vector<8x128xf32>
    %3 = arith.mulf %0, %2 : vector<8x128xf32>
    %c0_3 = arith.constant 0 : index
    %c0_4 = arith.constant 0 : index
    %4 = vector.load %arg3[%c0_3, %c0_4] : memref<1x128xf32, #tpu.memory_space<vmem>>, vector<1x128xf32>
    %5 = vector.broadcast %4 : vector<1x128xf32> to vector<8x128xf32>
    %6 = arith.addf %3, %5 : vector<8x128xf32>
    %cst = arith.constant 0.000000e+00 : f32
    %7 = vector.broadcast %cst : f32 to vector<8x128xf32>
    %8 = arith.maximumf %6, %7 : vector<8x128xf32>
    %c0_5 = arith.constant 0 : index
    %c0_6 = arith.constant 0 : index
    %9 = vector.load %arg4[%c0_5, %c0_6] : memref<8x128xf32, #tpu.memory_space<vmem>>, vector<8x128xf32>
    tpu.vector_store %arg4[%c0_5, %c0_6], %8 {strides = array<i32>} : memref<8x128xf32, #tpu.memory_space<vmem>>, vector<8x128xf32>,
    return
  }
  func.func @transform_0(%arg0: i32) -> (i32, i32) {
    %c0_i32 = arith.constant 0 : i32
    %c0_i32_0 = arith.constant 0 : i32
    return %arg0, %c0_i32 : i32, i32
  }
  func.func @transform_1(%arg0: i32) -> (i32, i32) {
    %c0_i32 = arith.constant 0 : i32
    %c0_i32_0 = arith.constant 0 : i32
    %c0_i32_1 = arith.constant 0 : i32
    return %c0_i32, %c0_i32_0 : i32, i32
  }
  func.func @transform_2(%arg0: i32) -> (i32, i32) {
    %c0_i32 = arith.constant 0 : i32
    %c0_i32_0 = arith.constant 0 : i32
    %c0_i32_1 = arith.constant 0 : i32
    return %c0_i32, %c0_i32_0 : i32, i32
  }
  func.func @transform_3(%arg0: i32) -> (i32, i32) {
    %c0_i32 = arith.constant 0 : i32
    %c0_i32_0 = arith.constant 0 : i32
    return %arg0, %c0_i32 : i32, i32
  }
}

</mosaic_0001>

<llo_original>
// kernel: mul.4
$region0: #{mul.4}
  %s0 = inlined_call_operand.vmem [shape: f32[3,3,4,8], index: 0, kind: input, shape index: {}]
  %s1 = inlined_call_operand.vmem [shape: f32[36,8], index: 1, kind: output, shape index: {}]
  $region1: #{mul.4} parent=0
    #allocation0 [shape = 'u8[36864]{0}', space=vmem, size = 0x9000, scoped, tag = 'scoped mem for input reshape']
    %s3 = sshllo.u32 0, 4
    %s4 = smul.addr 4, 8
    %s5 = scalar_lea.vmem %s0, %s4
    %v6 = vld [vmem:[%s5] sm:%s3]
    %s7 = scalar_lea.vmem [#allocation0], 64
    %8 = vst [vmem:[%s7] sm:%s3] %v6
    %s9 = smul.addr 4, 7
    %s10 = scalar_lea.vmem %s0, %s9
    %v11 = vld [vmem:[%s10] sm:%s3]
    %s12 = scalar_lea.vmem [#allocation0], 56
    %13 = vst [vmem:[%s12] sm:%s3] %v11
    %s14 = smul.addr 4, 6
    %s15 = scalar_lea.vmem %s0, %s14
    %v16 = vld [vmem:[%s15] sm:%s3]
    %s17 = scalar_lea.vmem [#allocation0], 48
    %18 = vst [vmem:[%s17] sm:%s3] %v16
    %s19 = smul.addr 4, 5
    %s20 = scalar_lea.vmem %s0, %s19
    %v21 = vld [vmem:[%s20] sm:%s3]
    %s22 = scalar_lea.vmem [#allocation0], 40
    %23 = vst [vmem:[%s22] sm:%s3] %v21
    %s24 = smul.addr 4, 4
    %s25 = scalar_lea.vmem %s0, %s24
    %v26 = vld [vmem:[%s25] sm:%s3]
    %s27 = scalar_lea.vmem [#allocation0], 32
    %28 = vst [vmem:[%s27] sm:%s3] %v26
    %s29 = smul.addr 4, 3
    %s30 = scalar_lea.vmem %s0, %s29
    %v31 = vld [vmem:[%s30] sm:%s3]
    %s32 = scalar_lea.vmem [#allocation0], 24
    %33 = vst [vmem:[%s32] sm:%s3] %v31
    %s34 = smul.addr 4, 2
    %s35 = scalar_lea.vmem %s0, %s34
    %v36 = vld [vmem:[%s35] sm:%s3]
    %s37 = scalar_lea.vmem [#allocation0], 16
    %38 = vst [vmem:[%s37] sm:%s3] %v36
    %s39 = scalar_lea.vmem %s0, 4
    %v40 = vld [vmem:[%s39] sm:%s3]
    %s41 = scalar_lea.vmem [#allocation0], 8
    %42 = vst [vmem:[%s41] sm:%s3] %v40
    %v43 = vld [vmem:[%s0] sm:%s3]
    %44 = vst [vmem:[#allocation0] sm:%s3] %v43
    %v45 = vld [vmem:[#allocation0] sm:$0xf]
    %vm46 = vcmask 64512
    %47 = vst.msk [vmem:[%s1] sm:$0xf] %vm46, %v45
    %s48 = scalar_lea.vmem [#allocation0], 8
    %v49 = vld [vmem:[%s48] sm:$0xf]
    %vm50 = vcmask 64512
    %s51 = scalar_lea.vmem %s1, 4
    %52 = vst.msk [vmem:[%s51] sm:$0xf] %vm50, %v49
    %s53 = scalar_lea.vmem [#allocation0], 16
    %v54 = vld [vmem:[%s53] sm:$0xf]
    %vm55 = vcmask 64512
    %s56 = scalar_lea.vmem %s1, 8
    %57 = vst.msk [vmem:[%s56] sm:$0xf] %vm55, %v54
    %s58 = scalar_lea.vmem [#allocation0], 24
    %v59 = vld [vmem:[%s58] sm:$0xf]
    %vm60 = vcmask 64512
    %s61 = scalar_lea.vmem %s1, 12
    %62 = vst.msk [vmem:[%s61] sm:$0xf] %vm60, %v59
    %s63 = scalar_lea.vmem [#allocation0], 32
    %v64 = vld [vmem:[%s63] sm:$0xf]
    %vm65 = vcmask 64512
    %s66 = scalar_lea.vmem %s1, 16
    %67 = vst.msk [vmem:[%s66] sm:$0xf] %vm65, %v64
    %s68 = scalar_lea.vmem [#allocation0], 40
    %v69 = vld [vmem:[%s68] sm:$0xf]
    %vm70 = vcmask 64512
    %s71 = scalar_lea.vmem %s1, 20
    %72 = vst.msk [vmem:[%s71] sm:$0xf] %vm70, %v69
    %s73 = scalar_lea.vmem [#allocation0], 48
    %v74 = vld [vmem:[%s73] sm:$0xf]
    %vm75 = vcmask 64512
    %s76 = scalar_lea.vmem %s1, 24
    %77 = vst.msk [vmem:[%s76] sm:$0xf] %vm75, %v74
    %s78 = scalar_lea.vmem [#allocation0], 56
    %v79 = vld [vmem:[%s78] sm:$0xf]
    %vm80 = vcmask 64512
    %s81 = scalar_lea.vmem %s1, 28
    %82 = vst.msk [vmem:[%s81] sm:$0xf] %vm80, %v79
    %s83 = scalar_lea.vmem [#allocation0], 64
    %v84 = vld [vmem:[%s83] sm:$0xf]
    %vm85 = vcmask 64512
    %s86 = scalar_lea.vmem %s1, 32
    %87 = vst.msk [vmem:[%s86] sm:$0xf] %vm85, %v84

// kernel: tile.14
$region0: #{tile.14}
  %s0 = inlined_call_operand.vmem [shape: f32[16,8], index: 0, kind: input, shape index: {}]
  %s1 = inlined_call_operand.vmem [shape: f32[1,128], index: 1, kind: output, shape index: {}]
  $region1: #{tile.14} parent=0
    #allocation0 [shape = 'u8[4096]{0}', space=vmem, size = 0x1000, scoped, tag = 'scoped mem for output reshape']
    %v2 = vld [vmem:[%s0] sm:$0x1]
    %vm3 = vcmask 64512
    %4 = vst.msk [vmem:[#allocation0] sm:$0x1] %vm3, %v2
    %s5 = scalar_lea.vmem %s0, 15
    %v6 = vld [vmem:[%s5] sm:$0x1]
    %7 = vrot.lane.b32.xlu0 %v6, 120
    %v8 = vpop.permute.xlu0 %7
    %vm9 = vcmask 1048512
    %10 = vst.msk [vmem:[#allocation0] sm:$0x1] %vm9, %v8
    %s11 = scalar_lea.vmem %s0, 14
    %v12 = vld [vmem:[%s11] sm:$0x1]
    %13 = vrot.lane.b32.xlu0 %v12, 112
    %v14 = vpop.permute.xlu0 %13
    %vm15 = vcmask 982912
    %16 = vst.msk [vmem:[#allocation0] sm:$0x1] %vm15, %v14
    %s17 = scalar_lea.vmem %s0, 13
    %v18 = vld [vmem:[%s17] sm:$0x1]
    %19 = vrot.lane.b32.xlu0 %v18, 104
    %v20 = vpop.permute.xlu0 %19
    %vm21 = vcmask 917312
    %22 = vst.msk [vmem:[#allocation0] sm:$0x1] %vm21, %v20
    %s23 = scalar_lea.vmem %s0, 12
    %v24 = vld [vmem:[%s23] sm:$0x1]
    %25 = vrot.lane.b32.xlu0 %v24, 96
    %v26 = vpop.permute.xlu0 %25
    %vm27 = vcmask 851712
    %28 = vst.msk [vmem:[#allocation0] sm:$0x1] %vm27, %v26
    %s29 = scalar_lea.vmem %s0, 11
    %v30 = vld [vmem:[%s29] sm:$0x1]
    %31 = vrot.lane.b32.xlu0 %v30, 88
    %v32 = vpop.permute.xlu0 %31
    %vm33 = vcmask 786112
    %34 = vst.msk [vmem:[#allocation0] sm:$0x1] %vm33, %v32
    %s35 = scalar_lea.vmem %s0, 10
    %v36 = vld [vmem:[%s35] sm:$0x1]
    %37 = vrot.lane.b32.xlu0 %v36, 80
    %v38 = vpop.permute.xlu0 %37
    %vm39 = vcmask 720512
    %40 = vst.msk [vmem:[#allocation0] sm:$0x1] %vm39, %v38
    %s41 = scalar_lea.vmem %s0, 9
    %v42 = vld [vmem:[%s41] sm:$0x1]
    %43 = vrot.lane.b32.xlu0 %v42, 72
    %v44 = vpop.permute.xlu0 %43
    %vm45 = vcmask 654912
    %46 = vst.msk [vmem:[#allocation0] sm:$0x1] %vm45, %v44
    %s47 = scalar_lea.vmem %s0, 8
    %v48 = vld [vmem:[%s47] sm:$0x1]
    %49 = vrot.lane.b32.xlu0 %v48, 64
    %v50 = vpop.permute.xlu0 %49
    %vm51 = vcmask 589312
    %52 = vst.msk [vmem:[#allocation0] sm:$0x1] %vm51, %v50
    %s53 = scalar_lea.vmem %s0, 7
    %v54 = vld [vmem:[%s53] sm:$0x1]
    %55 = vrot.lane.b32.xlu0 %v54, 56
    %v56 = vpop.permute.xlu0 %55
    %vm57 = vcmask 523712
    %58 = vst.msk [vmem:[#allocation0] sm:$0x1] %vm57, %v56
    %s59 = scalar_lea.vmem %s0, 6
    %v60 = vld [vmem:[%s59] sm:$0x1]
    %61 = vrot.lane.b32.xlu0 %v60, 48
    %v62 = vpop.permute.xlu0 %61
    %vm63 = vcmask 458112
    %64 = vst.msk [vmem:[#allocation0] sm:$0x1] %vm63, %v62
    %s65 = scalar_lea.vmem %s0, 5
    %v66 = vld [vmem:[%s65] sm:$0x1]
    %67 = vrot.lane.b32.xlu0 %v66, 40
    %v68 = vpop.permute.xlu0 %67
    %vm69 = vcmask 392512
    %70 = vst.msk [vmem:[#allocation0] sm:$0x1] %vm69, %v68
    %s71 = scalar_lea.vmem %s0, 4
    %v72 = vld [vmem:[%s71] sm:$0x1]
    %73 = vrot.lane.b32.xlu0 %v72, 32
    %v74 = vpop.permute.xlu0 %73
    %vm75 = vcmask 326912
    %76 = vst.msk [vmem:[#allocation0] sm:$0x1] %vm75, %v74
    %s77 = scalar_lea.vmem %s0, 3
    %v78 = vld [vmem:[%s77] sm:$0x1]
    %79 = vrot.lane.b32.xlu0 %v78, 24
    %v80 = vpop.permute.xlu0 %79
    %vm81 = vcmask 261312
    %82 = vst.msk [vmem:[#allocation0] sm:$0x1] %vm81, %v80
    %s83 = scalar_lea.vmem %s0, 2
    %v84 = vld [vmem:[%s83] sm:$0x1]
    %85 = vrot.lane.b32.xlu0 %v84, 16
    %v86 = vpop.permute.xlu0 %85
    %vm87 = vcmask 195712
    %88 = vst.msk [vmem:[#allocation0] sm:$0x1] %vm87, %v86
    %s89 = scalar_lea.vmem %s0, 1
    %v90 = vld [vmem:[%s89] sm:$0x1]
    %91 = vrot.lane.b32.xlu0 %v90, 8
    %v92 = vpop.permute.xlu0 %91
    %vm93 = vcmask 130112
    %94 = vst.msk [vmem:[#allocation0] sm:$0x1] %vm93, %v92
    %s96 = sshllo.u32 0, 1
    %v98 = vld [vmem:[#allocation0] sm:%s96]
    %s99 = sshllo.u32 0, 1
    %100 = vst [vmem:[%s1] sm:%s99] %v98

// kernel: conv_norm_act.3
$region0: #{conv_norm_act.3}
  #allocation0 [shape = 'u32[]', space=smem, size = 0x4, offset = 0x4, fixed_abs, tag = 'smem constant byte address 0x4 - core index']
  #allocation1 [shape = 'u32[144,128]{1,0:T(1,128)}', space=vmem, size = 0x12000, scoped, tag = 'internal scratch']
  %s0 = inlined_call_operand.vmem [shape: f32[32,128], index: 0, kind: input, shape index: {}, may-alias: {0,3}]
  %s1 = inlined_call_operand.vmem [shape: f32[1,128], index: 1, kind: input, shape index: {}]
  %s2 = inlined_call_operand.vmem [shape: f32[1,128], index: 2, kind: input, shape index: {}]
  %s3 = inlined_call_operand.vmem [shape: f32[32,128], index: 3, kind: output, shape index: {}, may-alias: {0,3}]
  %s4 = sld [smem:[#allocation0]]
  $region45: #{conv_norm_act.3} parent=0
    _
  %s6 = ssub.s32 1, %s4
  %s7 = scalar_select 0, %s6, %s4
  loop: start=0, step=1, limit=6
  $region2: #{conv_norm_act.3} parent=0 // loop_pre_header
    _
  $region3: #{conv_norm_act.3} parent=0 // loop_header
    %s9 = sphi 0, %s13
    %p10 = scmp.ge.s32.totalorder %s9, 6
    %s19 = sphi 0, %s21
    %s22 = sphi 0, %s19
    %s23 = sphi 0, %s22
    %s39 = sphi 0, %s23
    %s43 = sphi 0, %s43
    %s45 = sphi 0, %s43
    %s46 = sphi 0, %s45
    %s60 = sphi 0, %s46
    %s64 = sphi 0, %s64
    %s66 = sphi 0, %s64
    %s67 = sphi 0, %s66
    %s81 = sphi 0, %s67
    %s87 = sphi 0, %s89
    %s90 = sphi 0, %s87
    %s91 = sphi 0, %s90
    %s107 = sphi 0, %s91
  $region4: #{conv_norm_act.3} parent=0 // loop_header_branch
    %12 = sbr.rel (%p10) target = $region8
  $region5: #{conv_norm_act.3} parent=0 // loop_body
    %s14 = ssub.s32 %s9, 1
    %s15 = ssub.s32 %s9, 2
    %s16 = sadd.s32 %s9, 1
    %s17 = ssub.s32 %s9, %s16
    %p18 = scmp.eq.s32.totalorder %s17, 0
    %s20 = sadd.s32 %s19, 1
    %s21 = scalar_select %p18, %s19, %s20
    %p24 = pneg %p18
    %p25 = scmp.eq.s32.totalorder %s9, 3
    %p26 = por %p24, %p25
    %p27 = scmp.ne.s32.totalorder %s19, %s22
    %p28 = scmp.eq.s32.totalorder %s9, 0
    %p29 = por %p27, %p28
    %p30 = scmp.ne.s32.totalorder %s19, %s22
    %p31 = scmp.eq.s32.totalorder %s14, 3
    %p32 = por %p30, %p31
    %p33 = scmp.ne.s32.totalorder %s22, %s23
    %p34 = scmp.eq.s32.totalorder %s14, 0
    %p35 = por %p33, %p34
    %p36 = scmp.ne.s32.totalorder %s22, %s23
    %p37 = scmp.eq.s32.totalorder %s15, 3
    %p38 = por %p36, %p37
    %p40 = scmp.ne.s32.totalorder %s23, %s39
    %p41 = scmp.eq.s32.totalorder %s15, 0
    %p42 = por %p40, %p41
    %s44 = sadd.s32 %s43, 1
    %p47 = scmp.eq.s32.totalorder %s9, 3
    %p48 = scmp.ne.s32.totalorder %s43, %s45
    %p49 = scmp.eq.s32.totalorder %s9, 0
    %p50 = por %p48, %p49
    %p51 = scmp.ne.s32.totalorder %s43, %s45
    %p52 = scmp.eq.s32.totalorder %s14, 3
    %p53 = por %p51, %p52
    %p54 = scmp.ne.s32.totalorder %s45, %s46
    %p55 = scmp.eq.s32.totalorder %s14, 0
    %p56 = por %p54, %p55
    %p57 = scmp.ne.s32.totalorder %s45, %s46
    %p58 = scmp.eq.s32.totalorder %s15, 3
    %p59 = por %p57, %p58
    %p61 = scmp.ne.s32.totalorder %s46, %s60
    %p62 = scmp.eq.s32.totalorder %s15, 0
    %p63 = por %p61, %p62
    %s65 = sadd.s32 %s64, 1
    %p68 = scmp.eq.s32.totalorder %s9, 3
    %p69 = scmp.ne.s32.totalorder %s64, %s66
    %p70 = scmp.eq.s32.totalorder %s9, 0
    %p71 = por %p69, %p70
    %p72 = scmp.ne.s32.totalorder %s64, %s66
    %p73 = scmp.eq.s32.totalorder %s14, 3
    %p74 = por %p72, %p73
    %p75 = scmp.ne.s32.totalorder %s66, %s67
    %p76 = scmp.eq.s32.totalorder %s14, 0
    %p77 = por %p75, %p76
    %p78 = scmp.ne.s32.totalorder %s66, %s67
    %p79 = scmp.eq.s32.totalorder %s15, 3
    %p80 = por %p78, %p79
    %p82 = scmp.ne.s32.totalorder %s67, %s81
    %p83 = scmp.eq.s32.totalorder %s15, 0
    %p84 = por %p82, %p83
    %s85 = ssub.s32 %s9, %s16
    %p86 = scmp.eq.s32.totalorder %s85, 0
    %s88 = sadd.s32 %s87, 1
    %s89 = scalar_select %p86, %s87, %s88
    %p92 = pneg %p86
    %p93 = scmp.eq.s32.totalorder %s9, 3
    %p94 = por %p92, %p93
    %p95 = scmp.ne.s32.totalorder %s87, %s90
    %p96 = scmp.eq.s32.totalorder %s9, 0
    %p97 = por %p95, %p96
    %p98 = scmp.ne.s32.totalorder %s87, %s90
    %p99 = scmp.eq.s32.totalorder %s14, 3
    %p100 = por %p98, %p99
    %p101 = scmp.ne.s32.totalorder %s90, %s91
    %p102 = scmp.eq.s32.totalorder %s14, 0
    %p103 = por %p101, %p102
    %p104 = scmp.ne.s32.totalorder %s90, %s91
    %p105 = scmp.eq.s32.totalorder %s15, 3
    %p106 = por %p104, %p105
    %p108 = scmp.ne.s32.totalorder %s91, %s107
    %p109 = scmp.eq.s32.totalorder %s15, 0
    %p110 = por %p108, %p109
    %p111 = scmp.le.s32.totalorder 1, %s9
    %p112 = scmp.lt.s32.totalorder %s9, 5
    %p113 = pnand %p111, %p112
    %p114 = pneg %p113
    // Predicated region
    $region9: #{conv_norm_act.3} parent=5 // pred_check
      _
    $region10: #{conv_norm_act.3} parent=5 // pred_check_branch
      %116 = sbr.rel (%p113) target = $region12
    $region11: #{conv_norm_act.3} parent=5 // pred_region
      %s117 = ssub.s32 %s9, 1
      // Predicated region
      $region13: #{conv_norm_act.3} parent=11 // pred_check
        %p118 = pneg %p56
      $region14: #{conv_norm_act.3} parent=11 // pred_check_branch
        %120 = sbr.rel (%p118) target = $region16
      $region15: #{conv_norm_act.3} parent=11 // pred_region
        _
      $region16: #{conv_norm_act.3} parent=11 // pred_fallthru
        _
      // Predicated region
      $region17: #{conv_norm_act.3} parent=11 // pred_check
        %p121 = pneg %p77
      $region18: #{conv_norm_act.3} parent=11 // pred_check_branch
        %123 = sbr.rel (%p121) target = $region20
      $region19: #{conv_norm_act.3} parent=11 // pred_region
        _
      $region20: #{conv_norm_act.3} parent=11 // pred_fallthru
        _
    $region12: #{conv_norm_act.3} parent=5 // pred_fallthru
      _
    %p124 = scmp.lt.s32.totalorder %s9, 4
    // Predicated region
    $region21: #{conv_norm_act.3} parent=5 // pred_check
      %p125 = pneg %p124
    $region22: #{conv_norm_act.3} parent=5 // pred_check_branch
      %127 = sbr.rel (%p125) target = $region24
    $region23: #{conv_norm_act.3} parent=5 // pred_region
      // Predicated region
      $region25: #{conv_norm_act.3} parent=23 // pred_check
        %p128 = pneg %p29
      $region26: #{conv_norm_act.3} parent=23 // pred_check_branch
        %130 = sbr.rel (%p128) target = $region28
      $region27: #{conv_norm_act.3} parent=23 // pred_region
        %p131 = scmp.lt.s32.totalorder %s9, 3
        %s132 = scalar_select %p131, %s9, 3
        %s133 = smul.addr %s132, 8
        %s134 = scalar_lea.vmem %s0, %s133
      $region28: #{conv_norm_act.3} parent=23 // pred_fallthru
        _
    $region24: #{conv_norm_act.3} parent=5 // pred_fallthru
      _
    %p135 = scmp.le.s32.totalorder 1, %s9
    %p136 = scmp.lt.s32.totalorder %s9, 5
    %p137 = pnand %p135, %p136
    %p138 = pneg %p137
    // Predicated region
    $region29: #{conv_norm_act.3} parent=5 // pred_check
      _
    $region30: #{conv_norm_act.3} parent=5 // pred_check_branch
      %140 = sbr.rel (%p137) target = $region32
    $region31: #{conv_norm_act.3} parent=5 // pred_region
      %s141 = ssub.s32 %s9, 1
      %p142 = scmp.lt.s32.totalorder %s14, 3
      %s143 = scalar_select %p142, %s14, 3
      %s144 = smul.addr %s143, 8
      %s145 = scalar_lea.vmem %s0, %s144
      %p146 = pneg %p35
      %p147 = pneg %p32
      %p148 = pneg %p56
      %p149 = pneg %p53
      %p150 = pneg %p77
      %p151 = pneg %p74
      %p152 = pneg %p103
      %p153 = pneg %p100
      %p154 = scmp.lt.s32.totalorder %s14, 3
      %s155 = scalar_select %p154, %s14, 3
      %s156 = smul.addr %s155, 8
      %s157 = scalar_lea.vmem %s3, %s156
      %p158 = scmp.lt.s32.totalorder %s14, 3
      %s159 = scalar_select %p158, %s14, 3
      %s160 = smul.addr %s159, 8
      %s161 = scalar_lea.vmem %s0, %s160
      %p162 = scmp.lt.s32.totalorder %s14, 3
      %s163 = scalar_select %p162, %s14, 3
      %s164 = smul.addr %s163, 8
      %s165 = scalar_lea.vmem %s3, %s164
      %v166 = vld [vmem:[%s161] sm:$0xff]
      %v167 = vld [vmem:[%s1] sm:$0x1]
      %v169 = vlaneseq
      %v170 = vshrl.u32 %v169, 7
      %v171 = vsub.s32 0, %v170
      %v172 = vrot.slane %v167, %v171
      %v174 = vmul.f32 %v166, %v172
      %v175 = vld [vmem:[%s2] sm:$0x1]
      %v177 = vlaneseq
      %v178 = vshrl.u32 %v177, 7
      %v179 = vsub.s32 0, %v178
      %v180 = vrot.slane %v175, %v179
      %v182 = vadd.f32 %v174, %v180
      %v183 = vmax.f32 %v182, 0.0
      %184 = vst [vmem:[%s165] sm:$0xff] %v183
      %p185 = scmp.lt.s32.totalorder %s14, 3
      %s186 = scalar_select %p185, %s14, 3
      %s187 = smul.addr %s186, 8
      %s188 = scalar_lea.vmem %s3, %s187
      // Predicated region
      $region33: #{conv_norm_act.3} parent=31 // pred_check
        %p189 = pneg %p100
      $region34: #{conv_norm_act.3} parent=31 // pred_check_branch
        %191 = sbr.rel (%p189) target = $region36
      $region35: #{conv_norm_act.3} parent=31 // pred_region
        _
      $region36: #{conv_norm_act.3} parent=31 // pred_fallthru
        _
    $region32: #{conv_norm_act.3} parent=5 // pred_fallthru
      _
    %p192 = scmp.le.s32.totalorder 2, %s9
    // Predicated region
    $region37: #{conv_norm_act.3} parent=5 // pred_check
      %p193 = pneg %p192
    $region38: #{conv_norm_act.3} parent=5 // pred_check_branch
      %195 = sbr.rel (%p193) target = $region40
    $region39: #{conv_norm_act.3} parent=5 // pred_region
      %s196 = ssub.s32 %s9, 2
      // Predicated region
      $region41: #{conv_norm_act.3} parent=39 // pred_check
        %p197 = pneg %p106
      $region42: #{conv_norm_act.3} parent=39 // pred_check_branch
        %199 = sbr.rel (%p197) target = $region44
      $region43: #{conv_norm_act.3} parent=39 // pred_region
        %p200 = scmp.lt.s32.totalorder %s15, 3
        %s201 = scalar_select %p200, %s15, 3
        %s202 = smul.addr %s201, 8
        %s203 = scalar_lea.vmem %s3, %s202
      $region44: #{conv_norm_act.3} parent=39 // pred_fallthru
        _
    $region40: #{conv_norm_act.3} parent=5 // pred_fallthru
      _
  $region6: #{conv_norm_act.3} parent=0 // loop_footer
    %s13 = sadd.s32 1, %s9
  $region7: #{conv_norm_act.3} parent=0 // loop_footer_branch
    %8 = sbr.rel target = $region3
  $region8: #{conv_norm_act.3} parent=0 // loop_exit
    _

// kernel: conv_norm_act.2
$region0: #{conv_norm_act.2}
  #allocation0 [shape = 'u32[]', space=smem, size = 0x4, offset = 0x4, fixed_abs, tag = 'smem constant byte address 0x4 - core index']
  #allocation1 [shape = 'u32[144,128]{1,0:T(1,128)}', space=vmem, size = 0x12000, scoped, tag = 'internal scratch']
  %s0 = inlined_call_operand.vmem [shape: bf16[32,576], index: 0, kind: input, shape index: {}]
  %s1 = inlined_call_operand.vmem [shape: bf16[576,128], index: 1, kind: input, shape index: {}]
  %s2 = inlined_call_operand.vmem [shape: f32[32,128], index: 2, kind: output, shape index: {0}]
  %s3 = inlined_call_operand.vmem [shape: f32[4,8,128], index: 3, kind: output, shape index: {1}]
  %s4 = inlined_call_operand.vmem [shape: f32[4,8,128], index: 4, kind: output, shape index: {2}]
  %5 = xla_tuple %s2, %s3, %s4
  %s6 = sld [smem:[#allocation0]]
  $region57: #{conv_norm_act.2} parent=0
    _
  %s8 = ssub.s32 1, %s6
  %s9 = scalar_select 0, %s8, %s6
  loop: start=0, step=1, limit=6
  $region2: #{conv_norm_act.2} parent=0 // loop_pre_header
    _
  $region3: #{conv_norm_act.2} parent=0 // loop_header
    %s11 = sphi 0, %s15
    %p12 = scmp.ge.s32.totalorder %s11, 6
    %s21 = sphi 0, %s23
    %s24 = sphi 0, %s21
    %s25 = sphi 0, %s24
    %s41 = sphi 0, %s25
    %s45 = sphi 0, %s45
    %s47 = sphi 0, %s45
    %s48 = sphi 0, %s47
    %s62 = sphi 0, %s48
    %s68 = sphi 0, %s70
    %s71 = sphi 0, %s68
    %s72 = sphi 0, %s71
    %s88 = sphi 0, %s72
    %s94 = sphi 0, %s96
    %s97 = sphi 0, %s94
    %s98 = sphi 0, %s97
    %s114 = sphi 0, %s98
    %s120 = sphi 0, %s122
    %s123 = sphi 0, %s120
    %s124 = sphi 0, %s123
    %s140 = sphi 0, %s124
  $region4: #{conv_norm_act.2} parent=0 // loop_header_branch
    %14 = sbr.rel (%p12) target = $region8
  $region5: #{conv_norm_act.2} parent=0 // loop_body
    %s16 = ssub.s32 %s11, 1
    %s17 = ssub.s32 %s11, 2
    %s18 = sadd.s32 %s11, 1
    %s19 = ssub.s32 %s11, %s18
    %p20 = scmp.eq.s32.totalorder %s19, 0
    %s22 = sadd.s32 %s21, 1
    %s23 = scalar_select %p20, %s21, %s22
    %p26 = pneg %p20
    %p27 = scmp.eq.s32.totalorder %s11, 3
    %p28 = por %p26, %p27
    %p29 = scmp.ne.s32.totalorder %s21, %s24
    %p30 = scmp.eq.s32.totalorder %s11, 0
    %p31 = por %p29, %p30
    %p32 = scmp.ne.s32.totalorder %s21, %s24
    %p33 = scmp.eq.s32.totalorder %s16, 3
    %p34 = por %p32, %p33
    %p35 = scmp.ne.s32.totalorder %s24, %s25
    %p36 = scmp.eq.s32.totalorder %s16, 0
    %p37 = por %p35, %p36
    %p38 = scmp.ne.s32.totalorder %s24, %s25
    %p39 = scmp.eq.s32.totalorder %s17, 3
    %p40 = por %p38, %p39
    %p42 = scmp.ne.s32.totalorder %s25, %s41
    %p43 = scmp.eq.s32.totalorder %s17, 0
    %p44 = por %p42, %p43
    %s46 = sadd.s32 %s45, 1
    %p49 = scmp.eq.s32.totalorder %s11, 3
    %p50 = scmp.ne.s32.totalorder %s45, %s47
    %p51 = scmp.eq.s32.totalorder %s11, 0
    %p52 = por %p50, %p51
    %p53 = scmp.ne.s32.totalorder %s45, %s47
    %p54 = scmp.eq.s32.totalorder %s16, 3
    %p55 = por %p53, %p54
    %p56 = scmp.ne.s32.totalorder %s47, %s48
    %p57 = scmp.eq.s32.totalorder %s16, 0
    %p58 = por %p56, %p57
    %p59 = scmp.ne.s32.totalorder %s47, %s48
    %p60 = scmp.eq.s32.totalorder %s17, 3
    %p61 = por %p59, %p60
    %p63 = scmp.ne.s32.totalorder %s48, %s62
    %p64 = scmp.eq.s32.totalorder %s17, 0
    %p65 = por %p63, %p64
    %s66 = ssub.s32 %s11, %s18
    %p67 = scmp.eq.s32.totalorder %s66, 0
    %s69 = sadd.s32 %s68, 1
    %s70 = scalar_select %p67, %s68, %s69
    %p73 = pneg %p67
    %p74 = scmp.eq.s32.totalorder %s11, 3
    %p75 = por %p73, %p74
    %p76 = scmp.ne.s32.totalorder %s68, %s71
    %p77 = scmp.eq.s32.totalorder %s11, 0
    %p78 = por %p76, %p77
    %p79 = scmp.ne.s32.totalorder %s68, %s71
    %p80 = scmp.eq.s32.totalorder %s16, 3
    %p81 = por %p79, %p80
    %p82 = scmp.ne.s32.totalorder %s71, %s72
    %p83 = scmp.eq.s32.totalorder %s16, 0
    %p84 = por %p82, %p83
    %p85 = scmp.ne.s32.totalorder %s71, %s72
    %p86 = scmp.eq.s32.totalorder %s17, 3
    %p87 = por %p85, %p86
    %p89 = scmp.ne.s32.totalorder %s72, %s88
    %p90 = scmp.eq.s32.totalorder %s17, 0
    %p91 = por %p89, %p90
    %s92 = ssub.s32 %s11, %s18
    %p93 = scmp.eq.s32.totalorder %s92, 0
    %s95 = sadd.s32 %s94, 1
    %s96 = scalar_select %p93, %s94, %s95
    %p99 = pneg %p93
    %p100 = scmp.eq.s32.totalorder %s11, 3
    %p101 = por %p99, %p100
    %p102 = scmp.ne.s32.totalorder %s94, %s97
    %p103 = scmp.eq.s32.totalorder %s11, 0
    %p104 = por %p102, %p103
    %p105 = scmp.ne.s32.totalorder %s94, %s97
    %p106 = scmp.eq.s32.totalorder %s16, 3
    %p107 = por %p105, %p106
    %p108 = scmp.ne.s32.totalorder %s97, %s98
    %p109 = scmp.eq.s32.totalorder %s16, 0
    %p110 = por %p108, %p109
    %p111 = scmp.ne.s32.totalorder %s97, %s98
    %p112 = scmp.eq.s32.totalorder %s17, 3
    %p113 = por %p111, %p112
    %p115 = scmp.ne.s32.totalorder %s98, %s114
    %p116 = scmp.eq.s32.totalorder %s17, 0
    %p117 = por %p115, %p116
    %s118 = ssub.s32 %s11, %s18
    %p119 = scmp.eq.s32.totalorder %s118, 0
    %s121 = sadd.s32 %s120, 1
    %s122 = scalar_select %p119, %s120, %s121
    %p125 = pneg %p119
    %p126 = scmp.eq.s32.totalorder %s11, 3
    %p127 = por %p125, %p126
    %p128 = scmp.ne.s32.totalorder %s120, %s123
    %p129 = scmp.eq.s32.totalorder %s11, 0
    %p130 = por %p128, %p129
    %p131 = scmp.ne.s32.totalorder %s120, %s123
    %p132 = scmp.eq.s32.totalorder %s16, 3
    %p133 = por %p131, %p132
    %p134 = scmp.ne.s32.totalorder %s123, %s124
    %p135 = scmp.eq.s32.totalorder %s16, 0
    %p136 = por %p134, %p135
    %p137 = scmp.ne.s32.totalorder %s123, %s124
    %p138 = scmp.eq.s32.totalorder %s17, 3
    %p139 = por %p137, %p138
    %p141 = scmp.ne.s32.totalorder %s124, %s140
    %p142 = scmp.eq.s32.totalorder %s17, 0
    %p143 = por %p141, %p142
    %p144 = scmp.le.s32.totalorder 1, %s11
    %p145 = scmp.lt.s32.totalorder %s11, 5
    %p146 = pnand %p144, %p145
    %p147 = pneg %p146
    // Predicated region
    $region9: #{conv_norm_act.2} parent=5 // pred_check
      _
    $region10: #{conv_norm_act.2} parent=5 // pred_check_branch
      %149 = sbr.rel (%p146) target = $region12
    $region11: #{conv_norm_act.2} parent=5 // pred_region
      %s150 = ssub.s32 %s11, 1
      // Predicated region
      $region13: #{conv_norm_act.2} parent=11 // pred_check
        %p151 = pneg %p58
      $region14: #{conv_norm_act.2} parent=11 // pred_check_branch
        %153 = sbr.rel (%p151) target = $region16
      $region15: #{conv_norm_act.2} parent=11 // pred_region
        _
      $region16: #{conv_norm_act.2} parent=11 // pred_fallthru
        _
    $region12: #{conv_norm_act.2} parent=5 // pred_fallthru
      _
    %p154 = scmp.lt.s32.totalorder %s11, 4
    // Predicated region
    $region17: #{conv_norm_act.2} parent=5 // pred_check
      %p155 = pneg %p154
    $region18: #{conv_norm_act.2} parent=5 // pred_check_branch
      %157 = sbr.rel (%p155) target = $region20
    $region19: #{conv_norm_act.2} parent=5 // pred_region
      // Predicated region
      $region21: #{conv_norm_act.2} parent=19 // pred_check
        %p158 = pneg %p31
      $region22: #{conv_norm_act.2} parent=19 // pred_check_branch
        %160 = sbr.rel (%p158) target = $region24
      $region23: #{conv_norm_act.2} parent=19 // pred_region
        %p161 = scmp.lt.s32.totalorder %s11, 3
        %s162 = scalar_select %p161, %s11, 3
        %s163 = smul.addr %s162, 5
        %s164 = smul.addr %s163, 4
        %s165 = scalar_lea.vmem %s0, %s164
      $region24: #{conv_norm_act.2} parent=19 // pred_fallthru
        _
    $region20: #{conv_norm_act.2} parent=5 // pred_fallthru
      _
    %p166 = scmp.le.s32.totalorder 1, %s11
    %p167 = scmp.lt.s32.totalorder %s11, 5
    %p168 = pnand %p166, %p167
    %p169 = pneg %p168
    // Predicated region
    $region25: #{conv_norm_act.2} parent=5 // pred_check
      _
    $region26: #{conv_norm_act.2} parent=5 // pred_check_branch
      %171 = sbr.rel (%p168) target = $region28
    $region27: #{conv_norm_act.2} parent=5 // pred_region
      %s172 = ssub.s32 %s11, 1
      %p173 = scmp.lt.s32.totalorder %s16, 3
      %s174 = scalar_select %p173, %s16, 3
      %s175 = smul.addr %s174, 5
      %s176 = smul.addr %s175, 4
      %s177 = scalar_lea.vmem %s0, %s176
      %p178 = pneg %p37
      %p179 = pneg %p34
      %p180 = pneg %p58
      %p181 = pneg %p55
      %p182 = pneg %p84
      %p183 = pneg %p81
      %p184 = scmp.lt.s32.totalorder %s16, 3
      %s185 = scalar_select %p184, %s16, 3
      %s186 = smul.addr %s185, 8
      %s187 = scalar_lea.vmem %s2, %s186
      %p188 = pneg %p110
      %p189 = pneg %p107
      %p190 = scmp.lt.s32.totalorder %s16, 3
      %s191 = scalar_select %p190, %s16, 3
      %s192 = smul.addr %s191, 8
      %s193 = scalar_lea.vmem %s3, %s192
      %p194 = pneg %p136
      %p195 = pneg %p133
      %p196 = scmp.lt.s32.totalorder %s16, 3
      %s197 = scalar_select %p196, %s16, 3
      %s198 = smul.addr %s197, 8
      %s199 = scalar_lea.vmem %s4, %s198
      %p200 = scmp.lt.s32.totalorder %s16, 3
      %s201 = scalar_select %p200, %s16, 3
      %s202 = smul.addr %s201, 5
      %s203 = smul.addr %s202, 4
      %s204 = scalar_lea.vmem %s0, %s203
      %p205 = scmp.lt.s32.totalorder %s16, 3
      %s206 = scalar_select %p205, %s16, 3
      %s207 = smul.addr %s206, 8
      %s208 = scalar_lea.vmem %s2, %s207
      %p209 = scmp.lt.s32.totalorder %s16, 3
      %s210 = scalar_select %p209, %s16, 3
      %s211 = smul.addr %s210, 8
      %s212 = scalar_lea.vmem %s3, %s211
      %p213 = scmp.lt.s32.totalorder %s16, 3
      %s214 = scalar_select %p213, %s16, 3
      %s215 = smul.addr %s214, 8
      %s216 = scalar_lea.vmem %s4, %s215
      %v218 = vld [vmem:[%s204] sm:$0xff]
      %v219 = vld [vmem:[%s204 + $0x8] sm:$0xff]
      %v220 = vld [vmem:[%s204 + $0x10] sm:$0xf]
      %v221 = vld [vmem:[%s1] sm:$0xf]
      %v222 = vld [vmem:[%s1 + $0x4] sm:$0xf]
      %v223 = vld [vmem:[%s1 + $0x8] sm:$0xf]
      %v224 = vld [vmem:[%s1 + $0xc] sm:$0xf]
      %v225 = vld [vmem:[%s1 + $0x10] sm:$0xf]
      %v226 = vld [vmem:[%s1 + $0x14] sm:$0xf]
      %v227 = vld [vmem:[%s1 + $0x18] sm:$0xf]
      %v228 = vld [vmem:[%s1 + $0x1c] sm:$0xf]
      %v229 = vld [vmem:[%s1 + $0x20] sm:$0xf]
      %v230 = vld [vmem:[%s1 + $0x24] sm:$0xf]
      %v231 = vld [vmem:[%s1 + $0x28] sm:$0xf]
      %v232 = vld [vmem:[%s1 + $0x2c] sm:$0xf]
      %v233 = vld [vmem:[%s1 + $0x30] sm:$0xf]
      %v234 = vld [vmem:[%s1 + $0x34] sm:$0xf]
      %v235 = vld [vmem:[%s1 + $0x38] sm:$0xf]
      %v236 = vld [vmem:[%s1 + $0x3c] sm:$0xf]
      %v237 = vld [vmem:[%s1 + $0x40] sm:$0xf]
      %v238 = vld [vmem:[%s1 + $0x44] sm:$0xf]
      %v239 = vld [vmem:[%s1 + $0x48] sm:$0xf]
      %v240 = vld [vmem:[%s1 + $0x4c] sm:$0xf]
      %v241 = vld [vmem:[%s1 + $0x50] sm:$0xf]
      %v242 = vld [vmem:[%s1 + $0x54] sm:$0xf]
      %v243 = vld [vmem:[%s1 + $0x58] sm:$0xf]
      %v244 = vld [vmem:[%s1 + $0x5c] sm:$0xf]
      %v245 = vld [vmem:[%s1 + $0x60] sm:$0xf]
      %v246 = vld [vmem:[%s1 + $0x64] sm:$0xf]
      %v247 = vld [vmem:[%s1 + $0x68] sm:$0xf]
      %v248 = vld [vmem:[%s1 + $0x6c] sm:$0xf]
      %v249 = vld [vmem:[%s1 + $0x70] sm:$0xf]
      %v250 = vld [vmem:[%s1 + $0x74] sm:$0xf]
      %v251 = vld [vmem:[%s1 + $0x78] sm:$0xf]
      %v252 = vld [vmem:[%s1 + $0x7c] sm:$0xf]
      %v253 = vld [vmem:[%s1 + $0x80] sm:$0xf]
      %v254 = vld [vmem:[%s1 + $0x84] sm:$0xf]
      %v255 = vld [vmem:[%s1 + $0x88] sm:$0xf]
      %v256 = vld [vmem:[%s1 + $0x8c] sm:$0xf]
      %v257 = vld [vmem:[%s1 + $0x90] sm:$0xf]
      %v258 = vld [vmem:[%s1 + $0x94] sm:$0xf]
      %v259 = vld [vmem:[%s1 + $0x98] sm:$0xf]
      %v260 = vld [vmem:[%s1 + $0x9c] sm:$0xf]
      %v261 = vld [vmem:[%s1 + $0xa0] sm:$0xf]
      %v262 = vld [vmem:[%s1 + $0xa4] sm:$0xf]
      %v263 = vld [vmem:[%s1 + $0xa8] sm:$0xf]
      %v264 = vld [vmem:[%s1 + $0xac] sm:$0xf]
      %v265 = vld [vmem:[%s1 + $0xb0] sm:$0xf]
      %v266 = vld [vmem:[%s1 + $0xb4] sm:$0xf]
      %v267 = vld [vmem:[%s1 + $0xb8] sm:$0xf]
      %v268 = vld [vmem:[%s1 + $0xbc] sm:$0xf]
      %v269 = vld [vmem:[%s1 + $0xc0] sm:$0xf]
      %v270 = vld [vmem:[%s1 + $0xc4] sm:$0xf]
      %v271 = vld [vmem:[%s1 + $0xc8] sm:$0xf]
      %v272 = vld [vmem:[%s1 + $0xcc] sm:$0xf]
      %v273 = vld [vmem:[%s1 + $0xd0] sm:$0xf]
      %v274 = vld [vmem:[%s1 + $0xd4] sm:$0xf]
      %v275 = vld [vmem:[%s1 + $0xd8] sm:$0xf]
      %v276 = vld [vmem:[%s1 + $0xdc] sm:$0xf]
      %v277 = vld [vmem:[%s1 + $0xe0] sm:$0xf]
      %v278 = vld [vmem:[%s1 + $0xe4] sm:$0xf]
      %v279 = vld [vmem:[%s1 + $0xe8] sm:$0xf]
      %v280 = vld [vmem:[%s1 + $0xec] sm:$0xf]
      %v281 = vld [vmem:[%s1 + $0xf0] sm:$0xf]
      %v282 = vld [vmem:[%s1 + $0xf4] sm:$0xf]
      %v283 = vld [vmem:[%s1 + $0xf8] sm:$0xf]
      %v284 = vld [vmem:[%s1 + $0xfc] sm:$0xf]
      %v285 = vld [vmem:[%s1 + $0x100] sm:$0xf]
      %v286 = vld [vmem:[%s1 + $0x104] sm:$0xf]
      %v287 = vld [vmem:[%s1 + $0x108] sm:$0xf]
      %v288 = vld [vmem:[%s1 + $0x10c] sm:$0xf]
      %v289 = vld [vmem:[%s1 + $0x110] sm:$0xf]
      %v290 = vld [vmem:[%s1 + $0x114] sm:$0xf]
      %v291 = vld [vmem:[%s1 + $0x118] sm:$0xf]
      %v292 = vld [vmem:[%s1 + $0x11c] sm:$0xf]
      %v296 = vunpack.c.l.b16 %v218
      %v297 = vunpack.c.h.b16 %v218
      %v298 = vunpack.c.l.b16 %v219
      %v299 = vunpack.c.h.b16 %v219
      %v300 = vunpack.c.l.b16 %v220
      %v301 = vpack.c.b16 %v296, %v296
      %v302 = vpack.c.b16 %v297, %v297
      %v303 = vpack.c.b16 %v298, %v298
      %v304 = vpack.c.b16 %v299, %v299
      %v305 = vpack.c.b16 %v300, %v300
      %v382 = vunpack.c.l.b16 %v221
      %v383 = vunpack.c.l.b16 %v222
      %v384 = vunpack.c.l.b16 %v223
      %v385 = vunpack.c.l.b16 %v224
      %v386 = vunpack.c.l.b16 %v225
      %v387 = vunpack.c.l.b16 %v226
      %v388 = vunpack.c.l.b16 %v227
      %v389 = vunpack.c.l.b16 %v228
      %v390 = vunpack.c.l.b16 %v229
      %v391 = vunpack.c.l.b16 %v230
      %v392 = vunpack.c.l.b16 %v231
      %v393 = vunpack.c.l.b16 %v232
      %v394 = vunpack.c.l.b16 %v233
      %v395 = vunpack.c.l.b16 %v234
      %v396 = vunpack.c.l.b16 %v235
      %v397 = vunpack.c.l.b16 %v236
      %v398 = vunpack.c.l.b16 %v237
      %v399 = vunpack.c.l.b16 %v238
      %v400 = vunpack.c.l.b16 %v239
      %v401 = vunpack.c.l.b16 %v240
      %v402 = vunpack.c.l.b16 %v241
      %v403 = vunpack.c.l.b16 %v242
      %v404 = vunpack.c.l.b16 %v243
      %v405 = vunpack.c.l.b16 %v244
      %v406 = vunpack.c.l.b16 %v245
      %v407 = vunpack.c.l.b16 %v246
      %v408 = vunpack.c.l.b16 %v247
      %v409 = vunpack.c.l.b16 %v248
      %v410 = vunpack.c.l.b16 %v249
      %v411 = vunpack.c.l.b16 %v250
      %v412 = vunpack.c.l.b16 %v251
      %v413 = vunpack.c.l.b16 %v252
      %v414 = vunpack.c.l.b16 %v253
      %v415 = vunpack.c.l.b16 %v254
      %v416 = vunpack.c.l.b16 %v255
      %v417 = vunpack.c.l.b16 %v256
      %v418 = vunpack.c.l.b16 %v257
      %v419 = vunpack.c.l.b16 %v258
      %v420 = vunpack.c.l.b16 %v259
      %v421 = vunpack.c.l.b16 %v260
      %v422 = vunpack.c.l.b16 %v261
      %v423 = vunpack.c.l.b16 %v262
      %v424 = vunpack.c.l.b16 %v263
      %v425 = vunpack.c.l.b16 %v264
      %v426 = vunpack.c.l.b16 %v265
      %v427 = vunpack.c.l.b16 %v266
      %v428 = vunpack.c.l.b16 %v267
      %v429 = vunpack.c.l.b16 %v268
      %v430 = vunpack.c.l.b16 %v269
      %v431 = vunpack.c.l.b16 %v270
      %v432 = vunpack.c.l.b16 %v271
      %v433 = vunpack.c.l.b16 %v272
      %v434 = vunpack.c.l.b16 %v273
      %v435 = vunpack.c.l.b16 %v274
      %v436 = vunpack.c.l.b16 %v275
      %v437 = vunpack.c.l.b16 %v276
      %v438 = vunpack.c.l.b16 %v277
      %v439 = vunpack.c.l.b16 %v278
      %v440 = vunpack.c.l.b16 %v279
      %v441 = vunpack.c.l.b16 %v280
      %v442 = vunpack.c.l.b16 %v281
      %v443 = vunpack.c.l.b16 %v282
      %v444 = vunpack.c.l.b16 %v283
      %v445 = vunpack.c.l.b16 %v284
      %v446 = vunpack.c.l.b16 %v285
      %v447 = vunpack.c.l.b16 %v286
      %v448 = vunpack.c.l.b16 %v287
      %v449 = vunpack.c.l.b16 %v288
      %v450 = vunpack.c.l.b16 %v289
      %v451 = vunpack.c.l.b16 %v290
      %v452 = vunpack.c.l.b16 %v291
      %v453 = vunpack.c.l.b16 %v292
      %v454 = vpack.c.b16 %v383, %v382
      %v455 = vpack.c.b16 %v385, %v384
      %v456 = vpack.c.b16 %v387, %v386
      %v457 = vpack.c.b16 %v389, %v388
      %v458 = vpack.c.b16 %v391, %v390
      %v459 = vpack.c.b16 %v393, %v392
      %v460 = vpack.c.b16 %v395, %v394
      %v461 = vpack.c.b16 %v397, %v396
      %v462 = vpack.c.b16 %v399, %v398
      %v463 = vpack.c.b16 %v401, %v400
      %v464 = vpack.c.b16 %v403, %v402
      %v465 = vpack.c.b16 %v405, %v404
      %v466 = vpack.c.b16 %v407, %v406
      %v467 = vpack.c.b16 %v409, %v408
      %v468 = vpack.c.b16 %v411, %v410
      %v469 = vpack.c.b16 %v413, %v412
      %v470 = vpack.c.b16 %v415, %v414
      %v471 = vpack.c.b16 %v417, %v416
      %v472 = vpack.c.b16 %v419, %v418
      %v473 = vpack.c.b16 %v421, %v420
      %v474 = vpack.c.b16 %v423, %v422
      %v475 = vpack.c.b16 %v425, %v424
      %v476 = vpack.c.b16 %v427, %v426
      %v477 = vpack.c.b16 %v429, %v428
      %v478 = vpack.c.b16 %v431, %v430
      %v479 = vpack.c.b16 %v433, %v432
      %v480 = vpack.c.b16 %v435, %v434
      %v481 = vpack.c.b16 %v437, %v436
      %v482 = vpack.c.b16 %v439, %v438
      %v483 = vpack.c.b16 %v441, %v440
      %v484 = vpack.c.b16 %v443, %v442
      %v485 = vpack.c.b16 %v445, %v444
      %v486 = vpack.c.b16 %v447, %v446
      %v487 = vpack.c.b16 %v449, %v448
      %v488 = vpack.c.b16 %v451, %v450
      %v489 = vpack.c.b16 %v453, %v452
      %vm526 = vcmask 523264
      %v528 = vsel %vm526, %v305, 0
      %530 = vmatprep.subr.bf16.mxu0 0
      %531 = vmatpush1.bf16.msra.mxu0 %v454
      %532 = vmatprep.subr.bf16.mxu0 0
      %533 = vmatpush1.bf16.msra.mxu0 %v455
      %534 = vmatprep.subr.bf16.mxu0 0
      %535 = vmatpush1.bf16.msra.mxu0 %v456
      %536 = vmatprep.subr.bf16.mxu0 0
      %537 = vmatpush1.bf16.msra.mxu0 %v457
      %538 = vmatprep.subr.bf16.mxu0 0
      %539 = vmatpush1.bf16.msra.mxu0 %v458
      %540 = vmatprep.subr.bf16.mxu0 0
      %541 = vmatpush1.bf16.msra.mxu0 %v459
      %542 = vmatprep.subr.bf16.mxu0 0
      %543 = vmatpush1.bf16.msra.mxu0 %v460
      %544 = vmatprep.subr.bf16.mxu0 0
      %545 = vmatpush1.bf16.msra.mxu0 %v461
      %546 = vmatprep.subr.bf16.mxu0 0
      %547 = vmatpush1.bf16.msra.mxu0 %v462
      %548 = vmatprep.subr.bf16.mxu0 0
      %549 = vmatpush1.bf16.msra.mxu0 %v463
      %550 = vmatprep.subr.bf16.mxu0 0
      %551 = vmatpush1.bf16.msra.mxu0 %v464
      %552 = vmatprep.subr.bf16.mxu0 0
      %553 = vmatpush1.bf16.msra.mxu0 %v465
      %554 = vmatprep.subr.bf16.mxu0 0
      %555 = vmatpush1.bf16.msra.mxu0 %v466
      %556 = vmatprep.subr.bf16.mxu0 0
      %557 = vmatpush1.bf16.msra.mxu0 %v467
      %558 = vmatprep.subr.bf16.mxu0 0
      %559 = vmatpush1.bf16.msra.mxu0 %v468
      %560 = vmatprep.subr.bf16.mxu0 0
      %561 = vmatpush1.bf16.msra.mxu0 %v469
      %562 = vmatprep.mubr.bf16.mxu0 %v302
      %563 = vmatmul.mubr.bf16.gmra.mrb[0].mxu0 %v301
      %v564 = vpop.f32.mrb[0].mxu0
      %v565 = vadd.f32 0.0, %v564
      %v566 = vpop.f32.mrb[0].mxu0
      %v567 = vpop.f32.mrb[0].mxu0
      %v568 = vpop.f32.mrb[0].mxu0
      %569 = vdwg.mxu0
      %570 = vmatprep.subr.bf16.mxu0 0
      %571 = vmatpush1.bf16.msra.mxu0 %v470
      %572 = vmatprep.subr.bf16.mxu0 0
      %573 = vmatpush1.bf16.msra.mxu0 %v471
      %574 = vmatprep.subr.bf16.mxu0 0
      %575 = vmatpush1.bf16.msra.mxu0 %v472
      %576 = vmatprep.subr.bf16.mxu0 0
      %577 = vmatpush1.bf16.msra.mxu0 %v473
      %578 = vmatprep.subr.bf16.mxu0 0
      %579 = vmatpush1.bf16.msra.mxu0 %v474
      %580 = vmatprep.subr.bf16.mxu0 0
      %581 = vmatpush1.bf16.msra.mxu0 %v475
      %582 = vmatprep.subr.bf16.mxu0 0
      %583 = vmatpush1.bf16.msra.mxu0 %v476
      %584 = vmatprep.subr.bf16.mxu0 0
      %585 = vmatpush1.bf16.msra.mxu0 %v477
      %586 = vmatprep.subr.bf16.mxu0 0
      %587 = vmatpush1.bf16.msra.mxu0 %v478
      %588 = vmatprep.subr.bf16.mxu0 0
      %589 = vmatpush1.bf16.msra.mxu0 %v479
      %590 = vmatprep.subr.bf16.mxu0 0
      %591 = vmatpush1.bf16.msra.mxu0 %v480
      %592 = vmatprep.subr.bf16.mxu0 0
      %593 = vmatpush1.bf16.msra.mxu0 %v481
      %594 = vmatprep.subr.bf16.mxu0 0
      %595 = vmatpush1.bf16.msra.mxu0 %v482
      %596 = vmatprep.subr.bf16.mxu0 0
      %597 = vmatpush1.bf16.msra.mxu0 %v483
      %598 = vmatprep.subr.bf16.mxu0 0
      %599 = vmatpush1.bf16.msra.mxu0 %v484
      %600 = vmatprep.subr.bf16.mxu0 0
      %601 = vmatpush1.bf16.msra.mxu0 %v485
      %602 = vmatprep.mubr.bf16.mxu0 %v304
      %603 = vmatmul.mubr.bf16.gmra.mrb[0].mxu0 %v303
      %v604 = vpop.f32.mrb[0].mxu0
      %v605 = vadd.f32 %v565, %v604
      %v606 = vpop.f32.mrb[0].mxu0
      %v607 = vpop.f32.mrb[0].mxu0
      %v608 = vpop.f32.mrb[0].mxu0
      %609 = vdwg.mxu0
      %610 = vmatprep.subr.bf16.mxu0 0
      %611 = vmatpush1.bf16.msra.mxu0 %v486
      %612 = vmatprep.subr.bf16.mxu0 0
      %613 = vmatpush1.bf16.msra.mxu0 %v487
      %614 = vmatprep.subr.bf16.mxu0 0
      %615 = vmatpush1.bf16.msra.mxu0 %v488
      %616 = vmatprep.subr.bf16.mxu0 0
      %617 = vmatpush1.bf16.msra.mxu0 %v489
      %618 = vmatprep.subr.bf16.mxu0 0
      %619 = vmatpush1.bf16.msra.mxu0 0
      %620 = vmatprep.subr.bf16.mxu0 0
      %621 = vmatpush1.bf16.msra.mxu0 0
      %622 = vmatprep.subr.bf16.mxu0 0
      %623 = vmatpush1.bf16.msra.mxu0 0
      %624 = vmatprep.subr.bf16.mxu0 0
      %625 = vmatpush1.bf16.msra.mxu0 0
      %626 = vmatprep.subr.bf16.mxu0 0
      %627 = vmatpush1.bf16.msra.mxu0 0
      %628 = vmatprep.subr.bf16.mxu0 0
      %629 = vmatpush1.bf16.msra.mxu0 0
      %630 = vmatprep.subr.bf16.mxu0 0
      %631 = vmatpush1.bf16.msra.mxu0 0
      %632 = vmatprep.subr.bf16.mxu0 0
      %633 = vmatpush1.bf16.msra.mxu0 0
      %634 = vmatprep.subr.bf16.mxu0 0
      %635 = vmatpush1.bf16.msra.mxu0 0
      %636 = vmatprep.subr.bf16.mxu0 0
      %637 = vmatpush1.bf16.msra.mxu0 0
      %638 = vmatprep.subr.bf16.mxu0 0
      %639 = vmatpush1.bf16.msra.mxu0 0
      %640 = vmatprep.subr.bf16.mxu0 0
      %641 = vmatpush1.bf16.msra.mxu0 0
      %642 = vmatprep.mubr.bf16.mxu0 0
      %643 = vmatmul.mubr.bf16.gmra.mrb[0].mxu0 %v528
      %v644 = vpop.f32.mrb[0].mxu0
      %v645 = vadd.f32 %v605, %v644
      %v646 = vpop.f32.mrb[0].mxu0
      %v647 = vpop.f32.mrb[0].mxu0
      %v648 = vpop.f32.mrb[0].mxu0
      %649 = vdwg.mxu0
      %650 = vst [vmem:[%s208] sm:$0xff] %v645
      %s651 = smul.u32 %s16, 8
      %s652 = ssub.s32 32, %s651
      %p653 = scmp.gt.s32.totalorder %s652, 1
      %s654 = scalar_select %p653, %s652, 1
      %p655 = scmp.lt.s32.totalorder %s654, 8
      %s656 = scalar_select %p655, %s654, 8
      %v657 = vlaneseq
      %v658 = vshrl.u32 %v657, 7
      %v659 = vstv %s656
      %vm660 = vcmp.lt.s32.totalorder %v658, %v659
      %v661 = vsel %vm660, 1, 0
      %v662 = vcvt.s32.f32 %v661
      %v663 = vmul.f32 %v645, %v662
      %v664 = vrot.slane %v663, 4
      %v665 = vadd.f32 %v663, %v664
      %v666 = vrot.slane %v665, 2
      %v667 = vadd.f32 %v665, %v666
      %v668 = vrot.slane %v667, 1
      %v669 = vadd.f32 %v667, %v668
      %s670 = scvt.s32.f32 %s656
      %v671 = vstv %s670
      %v672 = vrcp.pop %v671
      %v673 = vmul.f32 %v669, %v672
      %v674 = vsub.f32 %v645, %v673
      %v675 = vmul.f32 %v674, %v662
      %v676 = vmul.f32 %v675, %v675
      %v677 = vrot.slane %v676, 4
      %v678 = vadd.f32 %v676, %v677
      %v679 = vrot.slane %v678, 2
      %v680 = vadd.f32 %v678, %v679
      %v681 = vrot.slane %v680, 1
      %v682 = vadd.f32 %v680, %v681
      %683 = vst [vmem:[%s212] sm:$0xff] %v669
      %684 = vst [vmem:[%s216] sm:$0xff] %v682
      %p685 = scmp.lt.s32.totalorder %s16, 3
      %s686 = scalar_select %p685, %s16, 3
      %s687 = smul.addr %s686, 8
      %s688 = scalar_lea.vmem %s2, %s687
      %p689 = scmp.lt.s32.totalorder %s16, 3
      %s690 = scalar_select %p689, %s16, 3
      %s691 = smul.addr %s690, 8
      %s692 = scalar_lea.vmem %s3, %s691
      %p693 = scmp.lt.s32.totalorder %s16, 3
      %s694 = scalar_select %p693, %s16, 3
      %s695 = smul.addr %s694, 8
      %s696 = scalar_lea.vmem %s4, %s695
      // Predicated region
      $region29: #{conv_norm_act.2} parent=27 // pred_check
        %p697 = pneg %p81
      $region30: #{conv_norm_act.2} parent=27 // pred_check_branch
        %699 = sbr.rel (%p697) target = $region32
      $region31: #{conv_norm_act.2} parent=27 // pred_region
        _
      $region32: #{conv_norm_act.2} parent=27 // pred_fallthru
        _
      // Predicated region
      $region33: #{conv_norm_act.2} parent=27 // pred_check
        %p700 = pneg %p107
      $region34: #{conv_norm_act.2} parent=27 // pred_check_branch
        %702 = sbr.rel (%p700) target = $region36
      $region35: #{conv_norm_act.2} parent=27 // pred_region
        _
      $region36: #{conv_norm_act.2} parent=27 // pred_fallthru
        _
      // Predicated region
      $region37: #{conv_norm_act.2} parent=27 // pred_check
        %p703 = pneg %p133
      $region38: #{conv_norm_act.2} parent=27 // pred_check_branch
        %705 = sbr.rel (%p703) target = $region40
      $region39: #{conv_norm_act.2} parent=27 // pred_region
        _
      $region40: #{conv_norm_act.2} parent=27 // pred_fallthru
        _
    $region28: #{conv_norm_act.2} parent=5 // pred_fallthru
      _
    %p706 = scmp.le.s32.totalorder 2, %s11
    // Predicated region
    $region41: #{conv_norm_act.2} parent=5 // pred_check
      %p707 = pneg %p706
    $region42: #{conv_norm_act.2} parent=5 // pred_check_branch
      %709 = sbr.rel (%p707) target = $region44
    $region43: #{conv_norm_act.2} parent=5 // pred_region
      %s710 = ssub.s32 %s11, 2
      // Predicated region
      $region45: #{conv_norm_act.2} parent=43 // pred_check
        %p711 = pneg %p87
      $region46: #{conv_norm_act.2} parent=43 // pred_check_branch
        %713 = sbr.rel (%p711) target = $region48
      $region47: #{conv_norm_act.2} parent=43 // pred_region
        %p714 = scmp.lt.s32.totalorder %s17, 3
        %s715 = scalar_select %p714, %s17, 3
        %s716 = smul.addr %s715, 8
        %s717 = scalar_lea.vmem %s2, %s716
      $region48: #{conv_norm_act.2} parent=43 // pred_fallthru
        _
      // Predicated region
      $region49: #{conv_norm_act.2} parent=43 // pred_check
        %p718 = pneg %p113
      $region50: #{conv_norm_act.2} parent=43 // pred_check_branch
        %720 = sbr.rel (%p718) target = $region52
      $region51: #{conv_norm_act.2} parent=43 // pred_region
        %p721 = scmp.lt.s32.totalorder %s17, 3
        %s722 = scalar_select %p721, %s17, 3
        %s723 = smul.addr %s722, 8
        %s724 = scalar_lea.vmem %s3, %s723
      $region52: #{conv_norm_act.2} parent=43 // pred_fallthru
        _
      // Predicated region
      $region53: #{conv_norm_act.2} parent=43 // pred_check
        %p725 = pneg %p139
      $region54: #{conv_norm_act.2} parent=43 // pred_check_branch
        %727 = sbr.rel (%p725) target = $region56
      $region55: #{conv_norm_act.2} parent=43 // pred_region
        %p728 = scmp.lt.s32.totalorder %s17, 3
        %s729 = scalar_select %p728, %s17, 3
        %s730 = smul.addr %s729, 8
        %s731 = scalar_lea.vmem %s4, %s730
      $region56: #{conv_norm_act.2} parent=43 // pred_fallthru
        _
    $region44: #{conv_norm_act.2} parent=5 // pred_fallthru
      _
  $region6: #{conv_norm_act.2} parent=0 // loop_footer
    %s15 = sadd.s32 1, %s11
  $region7: #{conv_norm_act.2} parent=0 // loop_footer_branch
    %10 = sbr.rel target = $region3
  $region8: #{conv_norm_act.2} parent=0 // loop_exit
    _

</llo_original>
